<compile_context>
chip_gen: v7x
topology: tpu7x:2x2x1
jax: 0.10.0
libtpu: 0.0.40
codegen_flags: <defaults>
</compile_context>

<pallas_src>
import functools

import jax
import jax.numpy as jnp
from jax.experimental import pallas as pl
from jax.experimental.pallas import tpu as pltpu

_LANES = 128
_BLOCK_BYTES = 4 * 1024 * 1024        # per-block byte budget (x4 buffers = 16 MiB VMEM)
_VMEM_LIMIT_BYTES = 32 * 1024 * 1024  # safe on v5e/v6e (128 MiB phys) and v7x (64 MiB phys)


def _relu6_kernel(x_ref, o_ref):
    x = x_ref[...]
    o_ref[...] = jnp.clip(x, 0.0, 6.0).astype(o_ref.dtype)


def _hswish_kernel(x_ref, o_ref):
    x = x_ref[...]
    # hard_swish(x) = x * clamp(x + 3, 0, 6) / 6
    o_ref[...] = (x * jnp.clip(x + 3.0, 0.0, 6.0) * (1.0 / 6.0)).astype(o_ref.dtype)


def _relu6_ref(x):
    return jnp.clip(x, 0.0, 6.0)


def _hswish_ref(x):
    return x * jnp.clip(x + 3.0, 0.0, 6.0) / 6.0


def _round_up(a: int, b: int) -> int:
    return -(-a // b) * b


@functools.partial(jax.jit, static_argnames=("act",))
def activation(x: jax.Array, act: str = "relu6") -> jax.Array:
    """Elementwise activation matching the PyTorch `Activation` module."""
    if act == "relu6":
        kernel, ref_fn = _relu6_kernel, _relu6_ref
    elif act == "hswish":
        kernel, ref_fn = _hswish_kernel, _hswish_ref
    else:
        raise ValueError(f"Unsupported activation: {act}")

    orig_shape = x.shape
    orig_dtype = x.dtype
    n = x.size
    itemsize = jnp.dtype(orig_dtype).itemsize

    # dtype-aware sublane packing: 8 rows (f32), 16 (bf16), 32 (int8/fp8).
    sublanes = 8 * max(1, 4 // itemsize)
    tile_elems = sublanes * _LANES

    # Tiny tensors: launch + layout plumbing dominates -> let XLA fuse it.
    if n < tile_elems:
        return ref_fn(x).astype(orig_dtype)

    flat = jnp.reshape(x, (-1,))
    pad = (-n) % tile_elems
    if pad:
        # Only awkward sizes pay this extra copy; typical conv-activation
        # shapes (N*C*H*W a multiple of tile_elems) go through untouched.
        flat = jnp.concatenate([flat, jnp.zeros((pad,), dtype=orig_dtype)])
    rows = flat.size // _LANES          # multiple of `sublanes`
    slab = jnp.reshape(flat, (rows, _LANES))

    # Byte-budgeted block rows (~4 MiB), rounded to the sublane packing.
    block_rows = max(
        sublanes, (_BLOCK_BYTES // (_LANES * itemsize)) // sublanes * sublanes
    )
    block_rows = min(block_rows, rows)
    # Keep >= 2 grid steps so the "parallel" axis can shard across v7x's 2 TCs.
    if rows >= 2 * sublanes:
        block_rows = min(block_rows, _round_up(pl.cdiv(rows, 2), sublanes))
    block_rows = max(sublanes, block_rows // sublanes * sublanes)

    grid = (pl.cdiv(rows, block_rows),)  # ragged last block handled by Pallas

    cost = pl.CostEstimate(
        flops=3 * n, transcendentals=0, bytes_accessed=2 * n * itemsize
    )

    out = pl.pallas_call(
        kernel,
        out_shape=jax.ShapeDtypeStruct((rows, _LANES), orig_dtype),
        grid_spec=pltpu.PrefetchScalarGridSpec(
            num_scalar_prefetch=0,
            grid=grid,
            in_specs=[pl.BlockSpec((block_rows, _LANES), lambda i: (i, 0))],
            out_specs=pl.BlockSpec((block_rows, _LANES), lambda i: (i, 0)),
        ),
        compiler_params=pltpu.CompilerParams(
            dimension_semantics=("parallel",),
            vmem_limit_bytes=_VMEM_LIMIT_BYTES,
        ),
        cost_estimate=cost,
    )(slab)

    if pad:
        return jnp.reshape(jnp.reshape(out, (-1,))[:n], orig_shape)
    return jnp.reshape(out, orig_shape)


if __name__ == "__main__":
    key = jax.random.PRNGKey(0)

    # 1) Small NCHW f32 input consistent with the module: batch=2, channels=4, 16x16.
    x = jax.random.normal(key, (2, 4, 16, 16), dtype=jnp.float32) * 4.0
    y_relu6 = jax.block_until_ready(activation(x, act="relu6"))
    y_hswish = jax.block_until_ready(activation(x, act="hswish"))
    assert y_relu6.shape == x.shape and y_relu6.dtype == x.dtype
    assert y_hswish.shape == x.shape and y_hswish.dtype == x.dtype
    assert jnp.allclose(y_relu6, _relu6_ref(x), atol=1e-6)
    assert jnp.allclose(y_hswish, _hswish_ref(x), atol=1e-6)

    # 2) Ragged grid path (rows not a multiple of block_rows).
    x2 = jax.random.normal(jax.random.PRNGKey(1), (3, 4, 16, 16), dtype=jnp.float32) * 4.0
    y2 = jax.block_until_ready(activation(x2, act="hswish"))
    assert jnp.allclose(y2, _hswish_ref(x2), atol=1e-6)

    # 3) Padded path (element count not a multiple of the vreg tile).
    x3 = jax.random.normal(jax.random.PRNGKey(2), (3, 5, 16, 16), dtype=jnp.float32) * 4.0
    y3 = jax.block_until_ready(activation(x3, act="hswish"))
    assert jnp.allclose(y3, _hswish_ref(x3), atol=1e-6)

    # 4) bf16 path (dtype-aware sublane packing = 16 rows).
    x4 = (jax.random.normal(jax.random.PRNGKey(3), (2, 8, 16, 16), dtype=jnp.float32) * 4.0
          ).astype(jnp.bfloat16)
    y4 = jax.block_until_ready(activation(x4, act="hswish"))
    assert y4.dtype == jnp.bfloat16
    ref4 = _hswish_ref(x4.astype(jnp.float32))
    assert jnp.allclose(y4.astype(jnp.float32), ref4, atol=0.1)

    print("KERNEL_OK")
</pallas_src>

<mosaic_0001>
module attributes {stable_mosaic.version = 11 : i64} {
  func.func @_relu6_kernel(%arg0: i32, %arg1: memref<8x128xf32, #tpu.memory_space<vmem>>, %arg2: memref<8x128xf32, #tpu.memory_space<vmem>>) attributes {dimension_semantics = [#tpu.dimension_semantics<parallel>], iteration_bounds = array<i64: 2>, scalar_prefetch = 0 : i64, scratch_operands = 0 : i64, tpu.core_type = #tpu.core_type<tc>, window_params = [{transform_indices = @transform_0, window_bounds = array<i64: 8, 128>}, {transform_indices = @transform_1, window_bounds = array<i64: 8, 128>}]} {
    %c0 = arith.constant 0 : index
    %c0_0 = arith.constant 0 : index
    %0 = vector.load %arg1[%c0, %c0_0] : memref<8x128xf32, #tpu.memory_space<vmem>>, vector<8x128xf32>
    %cst = arith.constant 0.000000e+00 : f32
    %cst_1 = arith.constant 6.000000e+00 : f32
    %1 = vector.broadcast %cst : f32 to vector<8x128xf32>
    %2 = arith.maximumf %1, %0 : vector<8x128xf32>
    %3 = vector.broadcast %cst_1 : f32 to vector<8x128xf32>
    %4 = arith.minimumf %3, %2 : vector<8x128xf32>
    %c0_2 = arith.constant 0 : index
    %c0_3 = arith.constant 0 : index
    %5 = vector.load %arg2[%c0_2, %c0_3] : memref<8x128xf32, #tpu.memory_space<vmem>>, vector<8x128xf32>
    tpu.vector_store %arg2[%c0_2, %c0_3], %4 {strides = array<i32>} : memref<8x128xf32, #tpu.memory_space<vmem>>, vector<8x128xf32>,
    return
  }
  func.func @transform_0(%arg0: i32) -> (i32, i32) {
    %c0_i32 = arith.constant 0 : i32
    %c0_i32_0 = arith.constant 0 : i32
    return %arg0, %c0_i32 : i32, i32
  }
  func.func @transform_1(%arg0: i32) -> (i32, i32) {
    %c0_i32 = arith.constant 0 : i32
    %c0_i32_0 = arith.constant 0 : i32
    return %arg0, %c0_i32 : i32, i32
  }
}

</mosaic_0001>

<llo_original>
// kernel: activation.1
$region0: #{activation.1}
  #allocation0 [shape = 'u32[]', space=smem, size = 0x4, offset = 0x4, fixed_abs, tag = 'smem constant byte address 0x4 - core index']
  #allocation1 [shape = 'u32[144,128]{1,0:T(1,128)}', space=vmem, size = 0x12000, scoped, tag = 'internal scratch']
  %s0 = inlined_call_operand.vmem [shape: f32[16,128], index: 0, kind: input, shape index: {}]
  %s1 = inlined_call_operand.vmem [shape: f32[16,128], index: 1, kind: output, shape index: {}]
  %s2 = sld [smem:[#allocation0]]
  $region37: #{activation.1} parent=0
    _
  %s4 = ssub.s32 1, %s2
  %s5 = scalar_select 0, %s4, %s2
  loop: start=0, step=1, limit=4
  $region2: #{activation.1} parent=0 // loop_pre_header
    _
  $region3: #{activation.1} parent=0 // loop_header
    %s7 = sphi 0, %s11
    %p8 = scmp.ge.s32.totalorder %s7, 4
    %s17 = sphi 0, %s19
    %s20 = sphi 0, %s17
    %s21 = sphi 0, %s20
    %s37 = sphi 0, %s21
    %s43 = sphi 0, %s45
    %s46 = sphi 0, %s43
    %s47 = sphi 0, %s46
    %s63 = sphi 0, %s47
  $region4: #{activation.1} parent=0 // loop_header_branch
    %10 = sbr.rel (%p8) target = $region8
  $region5: #{activation.1} parent=0 // loop_body
    %s12 = ssub.s32 %s7, 1
    %s13 = ssub.s32 %s7, 2
    %s14 = sadd.s32 %s7, 1
    %s15 = ssub.s32 %s7, %s14
    %p16 = scmp.eq.s32.totalorder %s15, 0
    %s18 = sadd.s32 %s17, 1
    %s19 = scalar_select %p16, %s17, %s18
    %p22 = pneg %p16
    %p23 = scmp.eq.s32.totalorder %s7, 1
    %p24 = por %p22, %p23
    %p25 = scmp.ne.s32.totalorder %s17, %s20
    %p26 = scmp.eq.s32.totalorder %s7, 0
    %p27 = por %p25, %p26
    %p28 = scmp.ne.s32.totalorder %s17, %s20
    %p29 = scmp.eq.s32.totalorder %s12, 1
    %p30 = por %p28, %p29
    %p31 = scmp.ne.s32.totalorder %s20, %s21
    %p32 = scmp.eq.s32.totalorder %s12, 0
    %p33 = por %p31, %p32
    %p34 = scmp.ne.s32.totalorder %s20, %s21
    %p35 = scmp.eq.s32.totalorder %s13, 1
    %p36 = por %p34, %p35
    %p38 = scmp.ne.s32.totalorder %s21, %s37
    %p39 = scmp.eq.s32.totalorder %s13, 0
    %p40 = por %p38, %p39
    %s41 = ssub.s32 %s7, %s14
    %p42 = scmp.eq.s32.totalorder %s41, 0
    %s44 = sadd.s32 %s43, 1
    %s45 = scalar_select %p42, %s43, %s44
    %p48 = pneg %p42
    %p49 = scmp.eq.s32.totalorder %s7, 1
    %p50 = por %p48, %p49
    %p51 = scmp.ne.s32.totalorder %s43, %s46
    %p52 = scmp.eq.s32.totalorder %s7, 0
    %p53 = por %p51, %p52
    %p54 = scmp.ne.s32.totalorder %s43, %s46
    %p55 = scmp.eq.s32.totalorder %s12, 1
    %p56 = por %p54, %p55
    %p57 = scmp.ne.s32.totalorder %s46, %s47
    %p58 = scmp.eq.s32.totalorder %s12, 0
    %p59 = por %p57, %p58
    %p60 = scmp.ne.s32.totalorder %s46, %s47
    %p61 = scmp.eq.s32.totalorder %s13, 1
    %p62 = por %p60, %p61
    %p64 = scmp.ne.s32.totalorder %s47, %s63
    %p65 = scmp.eq.s32.totalorder %s13, 0
    %p66 = por %p64, %p65
    %p67 = scmp.le.s32.totalorder 1, %s7
    %p68 = scmp.lt.s32.totalorder %s7, 3
    %p69 = pnand %p67, %p68
    %p70 = pneg %p69
    // Predicated region
    $region9: #{activation.1} parent=5 // pred_check
      _
    $region10: #{activation.1} parent=5 // pred_check_branch
      %72 = sbr.rel (%p69) target = $region12
    $region11: #{activation.1} parent=5 // pred_region
      %s73 = ssub.s32 %s7, 1
    $region12: #{activation.1} parent=5 // pred_fallthru
      _
    %p74 = scmp.lt.s32.totalorder %s7, 2
    // Predicated region
    $region13: #{activation.1} parent=5 // pred_check
      %p75 = pneg %p74
    $region14: #{activation.1} parent=5 // pred_check_branch
      %77 = sbr.rel (%p75) target = $region16
    $region15: #{activation.1} parent=5 // pred_region
      // Predicated region
      $region17: #{activation.1} parent=15 // pred_check
        %p78 = pneg %p27
      $region18: #{activation.1} parent=15 // pred_check_branch
        %80 = sbr.rel (%p78) target = $region20
      $region19: #{activation.1} parent=15 // pred_region
        %p81 = scmp.lt.s32.totalorder %s7, 1
        %s82 = scalar_select %p81, %s7, 1
        %s83 = smul.addr %s82, 8
        %s84 = scalar_lea.vmem %s0, %s83
      $region20: #{activation.1} parent=15 // pred_fallthru
        _
    $region16: #{activation.1} parent=5 // pred_fallthru
      _
    %p85 = scmp.le.s32.totalorder 1, %s7
    %p86 = scmp.lt.s32.totalorder %s7, 3
    %p87 = pnand %p85, %p86
    %p88 = pneg %p87
    // Predicated region
    $region21: #{activation.1} parent=5 // pred_check
      _
    $region22: #{activation.1} parent=5 // pred_check_branch
      %90 = sbr.rel (%p87) target = $region24
    $region23: #{activation.1} parent=5 // pred_region
      %s91 = ssub.s32 %s7, 1
      %p92 = scmp.lt.s32.totalorder %s12, 1
      %s93 = scalar_select %p92, %s12, 1
      %s94 = smul.addr %s93, 8
      %s95 = scalar_lea.vmem %s0, %s94
      %p96 = pneg %p33
      %p97 = pneg %p30
      %p98 = pneg %p59
      %p99 = pneg %p56
      %p100 = scmp.lt.s32.totalorder %s12, 1
      %s101 = scalar_select %p100, %s12, 1
      %s102 = smul.addr %s101, 8
      %s103 = scalar_lea.vmem %s1, %s102
      %p104 = scmp.lt.s32.totalorder %s12, 1
      %s105 = scalar_select %p104, %s12, 1
      %s106 = smul.addr %s105, 8
      %s107 = scalar_lea.vmem %s0, %s106
      %p108 = scmp.lt.s32.totalorder %s12, 1
      %s109 = scalar_select %p108, %s12, 1
      %s110 = smul.addr %s109, 8
      %s111 = scalar_lea.vmem %s1, %s110
      %v112 = vld [vmem:[%s107] sm:$0xff]
      %v113 = vmax.f32 %v112, 0.0
      %v114 = vmin.f32 %v113, 6.0
      %115 = vst [vmem:[%s111] sm:$0xff] %v114
      %p116 = scmp.lt.s32.totalorder %s12, 1
      %s117 = scalar_select %p116, %s12, 1
      %s118 = smul.addr %s117, 8
      %s119 = scalar_lea.vmem %s1, %s118
      // Predicated region
      $region25: #{activation.1} parent=23 // pred_check
        %p120 = pneg %p56
      $region26: #{activation.1} parent=23 // pred_check_branch
        %122 = sbr.rel (%p120) target = $region28
      $region27: #{activation.1} parent=23 // pred_region
        _
      $region28: #{activation.1} parent=23 // pred_fallthru
        _
    $region24: #{activation.1} parent=5 // pred_fallthru
      _
    %p123 = scmp.le.s32.totalorder 2, %s7
    // Predicated region
    $region29: #{activation.1} parent=5 // pred_check
      %p124 = pneg %p123
    $region30: #{activation.1} parent=5 // pred_check_branch
      %126 = sbr.rel (%p124) target = $region32
    $region31: #{activation.1} parent=5 // pred_region
      %s127 = ssub.s32 %s7, 2
      // Predicated region
      $region33: #{activation.1} parent=31 // pred_check
        %p128 = pneg %p62
      $region34: #{activation.1} parent=31 // pred_check_branch
        %130 = sbr.rel (%p128) target = $region36
      $region35: #{activation.1} parent=31 // pred_region
        %p131 = scmp.lt.s32.totalorder %s13, 1
        %s132 = scalar_select %p131, %s13, 1
        %s133 = smul.addr %s132, 8
        %s134 = scalar_lea.vmem %s1, %s133
      $region36: #{activation.1} parent=31 // pred_fallthru
        _
    $region32: #{activation.1} parent=5 // pred_fallthru
      _
  $region6: #{activation.1} parent=0 // loop_footer
    %s11 = sadd.s32 1, %s7
  $region7: #{activation.1} parent=0 // loop_footer_branch
    %6 = sbr.rel target = $region3
  $region8: #{activation.1} parent=0 // loop_exit
    _

</llo_original>
